<compile_context>
chip_gen: v7x
topology: tpu7x:2x2x1
jax: 0.10.0
libtpu: 0.0.40
codegen_flags: <defaults>
</compile_context>

<pallas_src>
from functools import partial

import jax
import jax.numpy as jnp
from jax.experimental import pallas as pl
from jax.experimental.pallas import tpu as pltpu

IN_F = 10      # fc1 in_features
HID = 20       # fc1 out_features / fc2 in_features
OUT_F = 10     # fc2 out_features
LANE = 128     # TPU lane width
SUB = 8        # TPU sublane width (f32)

K1 = 16        # padded contraction dim of first dot  (10 -> 16)
H_PAD = 32     # padded hidden width                  (20 -> 32)

# Packed params layout (rows of a (64, 128) f32 block):
_W1_OFF = 0                    # rows  0:16  W1^T (live [0:10, 0:20])
_B1_OFF = K1                   # rows 16:24  b1 replicated x8 (live cols 0:20)
_W2_OFF = K1 + SUB             # rows 24:56  W2^T (live [0:20, 0:10])
_B2_OFF = K1 + SUB + H_PAD     # rows 56:64  b2 replicated x8 (live cols 0:10)
_PARAM_ROWS = K1 + SUB + H_PAD + SUB   # 64

PALLAS_MIN_BATCH = 256   # below this, the fused XLA path wins (launch/DMA bound)


def mlp_kernel(x_ref, params_ref, out_ref):
    x = x_ref[...]                                      # (bt, 16)  f32
    w1 = params_ref[_W1_OFF:_W1_OFF + K1, :H_PAD]       # (16, 32)
    b1 = params_ref[_B1_OFF:_B1_OFF + SUB, :H_PAD]      # (8, 32)   replicated rows
    w2 = params_ref[_W2_OFF:_W2_OFF + H_PAD, :]         # (32, 128)
    b2 = params_ref[_B2_OFF:_B2_OFF + SUB, :]           # (8, 128)  replicated rows

    bt = x.shape[0]

    pre = jnp.dot(x, w1, preferred_element_type=jnp.float32)   # (bt, 32)
    if bt == SUB:
        pre = pre + b1                     # plain (8,32)+(8,32) VPU add
    else:
        pre = pre + b1[:1]                 # one sublane broadcast, amortized over tile
    h = jnp.tanh(pre)                      # (bt, 32); cols 20:32 stay exactly 0

    out = jnp.dot(h, w2, preferred_element_type=jnp.float32)   # (bt, 128) lane-dense
    if bt == SUB:
        out = out + b2
    else:
        out = out + b2[:1]
    out_ref[...] = out


def pack_params(w1, b1, w2, b2):
    """Pack PyTorch-layout weights into one dense (64, 128) f32 block.

    w1: (20, 10) = (out, in)   b1: (20,)
    w2: (10, 20) = (out, in)   b2: (10,)
    Done once; not on the per-call path.
    """
    p = jnp.zeros((_PARAM_ROWS, LANE), jnp.float32)
    p = p.at[_W1_OFF:_W1_OFF + IN_F, :HID].set(w1.T)                         # (10, 20)
    p = p.at[_B1_OFF:_B1_OFF + SUB, :HID].set(jnp.broadcast_to(b1, (SUB, HID)))
    p = p.at[_W2_OFF:_W2_OFF + HID, :OUT_F].set(w2.T)                        # (20, 10)
    p = p.at[_B2_OFF:_B2_OFF + SUB, :OUT_F].set(jnp.broadcast_to(b2, (SUB, OUT_F)))
    return p


def _ceil_to(n, m):
    return ((n + m - 1) // m) * m


@partial(jax.jit, static_argnames=("batch_tile",))
def mlp_forward_pallas(x, params, *, batch_tile=256):
    """x: (B, 10) f32; params: packed (64, 128) f32 block from pack_params."""
    B = x.shape[0]

    if B <= batch_tile:
        # Small batch: single gridless call, full-extent VMEM blocks (no pipeline
        # prologue / double-buffer bookkeeping).
        b_pad = _ceil_to(max(B, 1), SUB)
    else:
        # Large batch: 1-D grid over batch; params stay resident (constant
        # index_map); "parallel" lets v7x shard rows across both TensorCores.
        # batch_tile=256 -> (256,128) f32 out buffer = 128 KiB, far under the
        # v7x 64 MiB VMEM even with double buffering.
        b_pad = _ceil_to(B, batch_tile)

    x_pad = jnp.zeros((b_pad, K1), x.dtype).at[:B, :IN_F].set(x)

    cost = pl.CostEstimate(
        flops=2 * b_pad * (K1 * H_PAD + H_PAD * LANE),
        transcendentals=b_pad * H_PAD,
        bytes_accessed=4 * (x_pad.size + params.size + b_pad * LANE),
    )

    if B <= batch_tile:
        y_pad = pl.pallas_call(
            mlp_kernel,
            out_shape=jax.ShapeDtypeStruct((b_pad, LANE), jnp.float32),
            in_specs=[
                pl.BlockSpec(memory_space=pltpu.MemorySpace.VMEM),
                pl.BlockSpec(memory_space=pltpu.MemorySpace.VMEM),
            ],
            out_specs=pl.BlockSpec(memory_space=pltpu.MemorySpace.VMEM),
            cost_estimate=cost,
        )(x_pad, params)
    else:
        grid = (b_pad // batch_tile,)
        y_pad = pl.pallas_call(
            mlp_kernel,
            out_shape=jax.ShapeDtypeStruct((b_pad, LANE), jnp.float32),
            grid=grid,
            in_specs=[
                pl.BlockSpec((batch_tile, K1), lambda i: (i, 0)),
                pl.BlockSpec((_PARAM_ROWS, LANE), lambda i: (0, 0)),  # resident
            ],
            out_specs=pl.BlockSpec((batch_tile, LANE), lambda i: (i, 0)),
            compiler_params=pltpu.CompilerParams(
                dimension_semantics=("parallel",)),
            cost_estimate=cost,
        )(x_pad, params)

    return y_pad[:B, :OUT_F]


@jax.jit
def mlp_forward_xla(x, w1, b1, w2, b2):
    """Fused XLA dot-tanh-dot — fastest path at tiny batch (no custom-call boundary)."""
    return jnp.tanh(x @ w1.T + b1) @ w2.T + b2


def mlp_forward(x, w1, b1, w2, b2, packed_params=None):
    """Auto-dispatch: tiny batches -> fused XLA; large batches -> Pallas kernel."""
    if x.shape[0] < PALLAS_MIN_BATCH:
        return mlp_forward_xla(x, w1, b1, w2, b2)
    if packed_params is None:
        packed_params = pack_params(w1, b1, w2, b2)
    return mlp_forward_pallas(x, packed_params)


def init_params(key):
    """Deterministic init mimicking torch.nn.Linear uniform(-1/sqrt(fan_in), ...)."""
    k1, k2, k3, k4 = jax.random.split(key, 4)
    bound1 = 1.0 / (IN_F ** 0.5)
    bound2 = 1.0 / (HID ** 0.5)
    w1 = jax.random.uniform(k1, (HID, IN_F), jnp.float32, -bound1, bound1)
    b1 = jax.random.uniform(k2, (HID,), jnp.float32, -bound1, bound1)
    w2 = jax.random.uniform(k3, (OUT_F, HID), jnp.float32, -bound2, bound2)
    b2 = jax.random.uniform(k4, (OUT_F,), jnp.float32, -bound2, bound2)
    return w1, b1, w2, b2


if __name__ == "__main__":
    key = jax.random.PRNGKey(0)
    kx, kp, kx2 = jax.random.split(key, 3)

    # Input matching x1 = torch.randn(5, 10)
    x = jax.random.normal(kx, (5, 10), dtype=jnp.float32)

    w1, b1, w2, b2 = init_params(kp)
    params = pack_params(w1, b1, w2, b2)   # one-time pre-padded / pre-transposed

    ref_small = jnp.tanh(x @ w1.T + b1) @ w2.T + b2

    # 1) Pallas kernel at the module's batch size (gridless, single tile).
    y_pallas = jax.block_until_ready(mlp_forward_pallas(x, params))
    assert y_pallas.shape == (5, 10)
    assert jnp.allclose(y_pallas, ref_small, atol=1e-5, rtol=1e-5)

    # 2) Auto-dispatch path: at B=5 this takes the fused XLA route.
    y_auto = jax.block_until_ready(mlp_forward(x, w1, b1, w2, b2, params))
    assert jnp.allclose(y_auto, ref_small, atol=1e-5, rtol=1e-5)

    # 3) Batch-gridded Pallas path (resident params, parallel batch axis).
    xb = jax.random.normal(kx2, (1024, 10), dtype=jnp.float32)
    ref_big = jnp.tanh(xb @ w1.T + b1) @ w2.T + b2
    y_big = jax.block_until_ready(mlp_forward_pallas(xb, params))
    assert y_big.shape == (1024, 10)
    assert jnp.allclose(y_big, ref_big, atol=1e-4, rtol=1e-4)

    print("KERNEL_OK")
</pallas_src>

<mosaic_0001>
module attributes {stable_mosaic.version = 11 : i64} {
  func.func @mlp_kernel(%arg0: memref<8x16xf32, #tpu.memory_space<vmem>>, %arg1: memref<64x128xf32, #tpu.memory_space<vmem>>, %arg2: memref<8x128xf32, #tpu.memory_space<vmem>>) attributes {dimension_semantics = [], scalar_prefetch = 0 : i64, scratch_operands = 0 : i64, tpu.core_type = #tpu.core_type<tc>} {
    %c0 = arith.constant 0 : index
    %c0_0 = arith.constant 0 : index
    %0 = vector.load %arg0[%c0, %c0_0] : memref<8x16xf32, #tpu.memory_space<vmem>>, vector<8x16xf32>
    %c0_1 = arith.constant 0 : index
    %c0_2 = arith.constant 0 : index
    %1 = vector.load %arg1[%c0_1, %c0_2] : memref<64x128xf32, #tpu.memory_space<vmem>>, vector<16x32xf32>
    %c16 = arith.constant 16 : index
    %c0_3 = arith.constant 0 : index
    %2 = vector.load %arg1[%c16, %c0_3] : memref<64x128xf32, #tpu.memory_space<vmem>>, vector<8x32xf32>
    %c24 = arith.constant 24 : index
    %c0_4 = arith.constant 0 : index
    %3 = vector.load %arg1[%c24, %c0_4] : memref<64x128xf32, #tpu.memory_space<vmem>>, vector<32x128xf32>
    %c56 = arith.constant 56 : index
    %c0_5 = arith.constant 0 : index
    %4 = vector.load %arg1[%c56, %c0_5] : memref<64x128xf32, #tpu.memory_space<vmem>>, vector<8x128xf32>
    %cst = arith.constant dense<0.000000e+00> : vector<8x32xf32>
    %5 = tpu.matmul %0, %1, %cst {dimension_numbers = #tpu.dot_dimension_numbers<[1], [0], [0], [1], [0, 0, 1, 1], [], []>} : vector<8x16xf32>, vector<16x32xf32>, vector<8x32xf32> -> vector<8x32xf32>
    %6 = arith.addf %5, %2 : vector<8x32xf32>
    %7 = math.tanh %6 : vector<8x32xf32>
    %cst_6 = arith.constant dense<0.000000e+00> : vector<8x128xf32>
    %8 = tpu.matmul %7, %3, %cst_6 {dimension_numbers = #tpu.dot_dimension_numbers<[1], [0], [0], [1], [0, 0, 1, 1], [], []>} : vector<8x32xf32>, vector<32x128xf32>, vector<8x128xf32> -> vector<8x128xf32>
    %9 = arith.addf %8, %4 : vector<8x128xf32>
    %c0_7 = arith.constant 0 : index
    %c0_8 = arith.constant 0 : index
    %10 = vector.load %arg2[%c0_7, %c0_8] : memref<8x128xf32, #tpu.memory_space<vmem>>, vector<8x128xf32>
    tpu.vector_store %arg2[%c0_7, %c0_8], %9 {strides = array<i32>} : memref<8x128xf32, #tpu.memory_space<vmem>>, vector<8x128xf32>,
    return
  }
}

</mosaic_0001>

<llo_original>
// kernel: mlp_forward_pallas.1
$region0: #{mlp_forward_pallas.1}
  #allocation0 [shape = 'u32[]', space=smem, size = 0x4, offset = 0x4, fixed_abs, tag = 'smem constant byte address 0x4 - core index']
  #allocation1 [shape = 'u32[144,128]{1,0:T(1,128)}', space=vmem, size = 0x12000, scoped, tag = 'internal scratch']
  %s0 = inlined_call_operand.vmem [shape: f32[8,16], index: 0, kind: input, shape index: {}]
  %s1 = inlined_call_operand.hbm [shape: f32[64,128], index: 1, kind: input, shape index: {}]
  %s2 = inlined_call_operand.hbm [shape: f32[8,128], index: 2, kind: output, shape index: {}]
  %s3 = sld [smem:[#allocation0]]
  $region22: #{mlp_forward_pallas.1} parent=0
    _
  %s5 = ssub.s32 1, %s3
  %s6 = scalar_select 0, %s5, %s3
  $region1: #{mlp_forward_pallas.1} parent=0
    #allocation2 [shape = 'u8[32768]{0}', space=vmem, size = 0x8000, scoped, tag = 'input window, operand 1, single buffered']
    #allocation3 [shape = 's32[1]{0}', space=sflag, size = 0x4, scoped, tag = 'scoped memory for mlp_forward_pallas.1']
    #allocation4 [shape = 's32[1]{0}', space=sflag, size = 0x4, scoped, tag = 'scoped memory for mlp_forward_pallas.1']
    #allocation5 [shape = 'u8[4096]{0}', space=vmem, size = 0x1000, scoped, tag = 'output window, operand 0, single buffered']
    %7 = vsyncpa [#allocation3], 0
    %8 = vsyncpa [#allocation4], 0
    // Predicated region
    $region2: #{mlp_forward_pallas.1} parent=1 // pred_check
      _
    $region3: #{mlp_forward_pallas.1} parent=1 // pred_check_branch
      %10 = sbr.rel (0) target = $region5
    $region4: #{mlp_forward_pallas.1} parent=1 // pred_region
      _
    $region5: #{mlp_forward_pallas.1} parent=1 // pred_fallthru
      _
    // Predicated region
    $region6: #{mlp_forward_pallas.1} parent=1 // pred_check
      _
    $region7: #{mlp_forward_pallas.1} parent=1 // pred_check_branch
      %12 = sbr.rel (0) target = $region9
    $region8: #{mlp_forward_pallas.1} parent=1 // pred_region
      %s14 = ssub.s32 1024, 1024
      %15 = vsyncadd [#allocation3], %s14
      %s16 = sshll.u32 [#allocation2], 4
      %s17 = int_to_ptr.vmem [resolvable:$true] %s16
      %22 = dma.hbm_to_vmem [thread:$0]  %s1, 1024, %s17, [#allocation3], 128, 128, 8
    $region9: #{mlp_forward_pallas.1} parent=1 // pred_fallthru
      _
    // Predicated region
    $region10: #{mlp_forward_pallas.1} parent=1 // pred_check
      _
    $region11: #{mlp_forward_pallas.1} parent=1 // pred_check_branch
      %24 = sbr.rel (0) target = $region13
    $region12: #{mlp_forward_pallas.1} parent=1 // pred_region
      %25 = dma.done [#allocation3], 1024
    $region13: #{mlp_forward_pallas.1} parent=1 // pred_fallthru
      _
    %v26 = vld [vmem:[%s0] sm:$0xff]
    %v27 = vld [vmem:[#allocation2] sm:$0xff]
    %v28 = vld [vmem:[#allocation2 + $0x8] sm:$0xff]
    %v29 = vld [vmem:[#allocation2 + $0x10] sm:$0xff]
    %v30 = vld [vmem:[#allocation2 + $0x18] sm:$0xff]
    %v31 = vld [vmem:[#allocation2 + $0x20] sm:$0xff]
    %v32 = vld [vmem:[#allocation2 + $0x28] sm:$0xff]
    %v33 = vld [vmem:[#allocation2 + $0x30] sm:$0xff]
    %v34 = vld [vmem:[#allocation2 + $0x38] sm:$0xff]
    %vm35 = vcmask 130048
    %v37 = vsel %vm35, %v26, 0
    %39 = vmatprep.subr.mxu0 0.0
    %40 = vmatpush1.msra.mxu0 %v27
    %41 = vmatprep.subr.mxu0 0.0
    %42 = vmatpush1.msra.mxu0 %v28
    %43 = vmatprep.subr.mxu0 0.0
    %44 = vmatpush1.msra.mxu0 0.0
    %45 = vmatprep.subr.mxu0 0.0
    %46 = vmatpush1.msra.mxu0 0.0
    %47 = vmatprep.subr.mxu0 0.0
    %48 = vmatpush1.msra.mxu0 0.0
    %49 = vmatprep.subr.mxu0 0.0
    %50 = vmatpush1.msra.mxu0 0.0
    %51 = vmatprep.subr.mxu0 0.0
    %52 = vmatpush1.msra.mxu0 0.0
    %53 = vmatprep.subr.mxu0 0.0
    %54 = vmatpush1.msra.mxu0 0.0
    %55 = vmatprep.subr.mxu0 0.0
    %56 = vmatpush1.msra.mxu0 0.0
    %57 = vmatprep.subr.mxu0 0.0
    %58 = vmatpush1.msra.mxu0 0.0
    %59 = vmatprep.subr.mxu0 0.0
    %60 = vmatpush1.msra.mxu0 0.0
    %61 = vmatprep.subr.mxu0 0.0
    %62 = vmatpush1.msra.mxu0 0.0
    %63 = vmatprep.subr.mxu0 0.0
    %64 = vmatpush1.msra.mxu0 0.0
    %65 = vmatprep.subr.mxu0 0.0
    %66 = vmatpush1.msra.mxu0 0.0
    %67 = vmatprep.subr.mxu0 0.0
    %68 = vmatpush1.msra.mxu0 0.0
    %69 = vmatprep.subr.mxu0 0.0
    %70 = vmatpush1.msra.mxu0 0.0
    %71 = vmatprep.subr.mxu0 0.0
    %72 = vmatpush1.msra.mxu0 0.0
    %73 = vmatprep.subr.mxu0 0.0
    %74 = vmatpush1.msra.mxu0 0.0
    %75 = vmatprep.subr.mxu0 0.0
    %76 = vmatpush1.msra.mxu0 0.0
    %77 = vmatprep.subr.mxu0 0.0
    %78 = vmatpush1.msra.mxu0 0.0
    %79 = vmatprep.subr.mxu0 0.0
    %80 = vmatpush1.msra.mxu0 0.0
    %81 = vmatprep.subr.mxu0 0.0
    %82 = vmatpush1.msra.mxu0 0.0
    %83 = vmatprep.subr.mxu0 0.0
    %84 = vmatpush1.msra.mxu0 0.0
    %85 = vmatprep.subr.mxu0 0.0
    %86 = vmatpush1.msra.mxu0 0.0
    %87 = vmatprep.subr.mxu0 0.0
    %88 = vmatpush1.msra.mxu0 0.0
    %89 = vmatprep.subr.mxu0 0.0
    %90 = vmatpush1.msra.mxu0 0.0
    %91 = vmatprep.subr.mxu0 0.0
    %92 = vmatpush1.msra.mxu0 0.0
    %93 = vmatprep.subr.mxu0 0.0
    %94 = vmatpush1.msra.mxu0 0.0
    %95 = vmatprep.subr.mxu0 0.0
    %96 = vmatpush1.msra.mxu0 0.0
    %97 = vmatprep.subr.mxu0 0.0
    %98 = vmatpush1.msra.mxu0 0.0
    %99 = vmatprep.subr.mxu0 0.0
    %100 = vmatpush1.msra.mxu0 0.0
    %101 = vmatprep.subr.mxu0 0.0
    %102 = vmatpush1.msra.mxu0 0.0
    %103 = vmatprep.mubr.f32.mxu0 0.0
    %104 = vmatmul.mubr.f32.gmra.mrb[0].mxu0 %v37
    %v105 = vpop.f32.mrb[0].mxu0
    %v106 = vadd.f32 %v29, %v105
    %v107 = vpop.f32.mrb[0].mxu0
    %108 = vdwg.mxu0
    %v109 = vtanh.pop %v106
    %vm110 = vcmask 261120
    %v112 = vsel %vm110, %v109, 0
    %114 = vmatprep.subr.mxu0 0.0
    %115 = vmatpush1.msra.mxu0 %v30
    %116 = vmatprep.subr.mxu0 0.0
    %117 = vmatpush1.msra.mxu0 %v31
    %118 = vmatprep.subr.mxu0 0.0
    %119 = vmatpush1.msra.mxu0 %v32
    %120 = vmatprep.subr.mxu0 0.0
    %121 = vmatpush1.msra.mxu0 %v33
    %122 = vmatprep.subr.mxu0 0.0
    %123 = vmatpush1.msra.mxu0 0.0
    %124 = vmatprep.subr.mxu0 0.0
    %125 = vmatpush1.msra.mxu0 0.0
    %126 = vmatprep.subr.mxu0 0.0
    %127 = vmatpush1.msra.mxu0 0.0
    %128 = vmatprep.subr.mxu0 0.0
    %129 = vmatpush1.msra.mxu0 0.0
    %130 = vmatprep.subr.mxu0 0.0
    %131 = vmatpush1.msra.mxu0 0.0
    %132 = vmatprep.subr.mxu0 0.0
    %133 = vmatpush1.msra.mxu0 0.0
    %134 = vmatprep.subr.mxu0 0.0
    %135 = vmatpush1.msra.mxu0 0.0
    %136 = vmatprep.subr.mxu0 0.0
    %137 = vmatpush1.msra.mxu0 0.0
    %138 = vmatprep.subr.mxu0 0.0
    %139 = vmatpush1.msra.mxu0 0.0
    %140 = vmatprep.subr.mxu0 0.0
    %141 = vmatpush1.msra.mxu0 0.0
    %142 = vmatprep.subr.mxu0 0.0
    %143 = vmatpush1.msra.mxu0 0.0
    %144 = vmatprep.subr.mxu0 0.0
    %145 = vmatpush1.msra.mxu0 0.0
    %146 = vmatprep.subr.mxu0 0.0
    %147 = vmatpush1.msra.mxu0 0.0
    %148 = vmatprep.subr.mxu0 0.0
    %149 = vmatpush1.msra.mxu0 0.0
    %150 = vmatprep.subr.mxu0 0.0
    %151 = vmatpush1.msra.mxu0 0.0
    %152 = vmatprep.subr.mxu0 0.0
    %153 = vmatpush1.msra.mxu0 0.0
    %154 = vmatprep.subr.mxu0 0.0
    %155 = vmatpush1.msra.mxu0 0.0
    %156 = vmatprep.subr.mxu0 0.0
    %157 = vmatpush1.msra.mxu0 0.0
    %158 = vmatprep.subr.mxu0 0.0
    %159 = vmatpush1.msra.mxu0 0.0
    %160 = vmatprep.subr.mxu0 0.0
    %161 = vmatpush1.msra.mxu0 0.0
    %162 = vmatprep.subr.mxu0 0.0
    %163 = vmatpush1.msra.mxu0 0.0
    %164 = vmatprep.subr.mxu0 0.0
    %165 = vmatpush1.msra.mxu0 0.0
    %166 = vmatprep.subr.mxu0 0.0
    %167 = vmatpush1.msra.mxu0 0.0
    %168 = vmatprep.subr.mxu0 0.0
    %169 = vmatpush1.msra.mxu0 0.0
    %170 = vmatprep.subr.mxu0 0.0
    %171 = vmatpush1.msra.mxu0 0.0
    %172 = vmatprep.subr.mxu0 0.0
    %173 = vmatpush1.msra.mxu0 0.0
    %174 = vmatprep.subr.mxu0 0.0
    %175 = vmatpush1.msra.mxu0 0.0
    %176 = vmatprep.subr.mxu0 0.0
    %177 = vmatpush1.msra.mxu0 0.0
    %178 = vmatprep.mubr.f32.mxu0 0.0
    %179 = vmatmul.mubr.f32.gmra.mrb[0].mxu0 %v112
    %v180 = vpop.f32.mrb[0].mxu0
    %v181 = vadd.f32 %v34, %v180
    %v182 = vpop.f32.mrb[0].mxu0
    %183 = vdwg.mxu0
    %184 = vst [vmem:[#allocation5] sm:$0xff] %v181
    // Predicated region
    $region14: #{mlp_forward_pallas.1} parent=1 // pred_check
      _
    $region15: #{mlp_forward_pallas.1} parent=1 // pred_check_branch
      %186 = sbr.rel (0) target = $region17
    $region16: #{mlp_forward_pallas.1} parent=1 // pred_region
      %s188 = ssub.s32 128, 128
      %189 = vsyncadd [#allocation4], %s188
      %s191 = sshll.u32 [#allocation5], 4
      %s192 = int_to_ptr.vmem [resolvable:$true] %s191
      %194 = dma.vmem_to_hbm [thread:$0]  %s192, 128, %s2, [#allocation4]
    $region17: #{mlp_forward_pallas.1} parent=1 // pred_fallthru
      _
    // Predicated region
    $region18: #{mlp_forward_pallas.1} parent=1 // pred_check
      _
    $region19: #{mlp_forward_pallas.1} parent=1 // pred_check_branch
      %196 = sbr.rel (0) target = $region21
    $region20: #{mlp_forward_pallas.1} parent=1 // pred_region
      %197 = dma.done [#allocation4], 128
    $region21: #{mlp_forward_pallas.1} parent=1 // pred_fallthru
      _
    %198 = vsyncpa [#allocation3], 1
    %199 = vsyncpa [#allocation4], 1

</llo_original>
